<compile_context>
chip_gen: v6e
topology: v6e:2x2x1
jax: 0.10.0
libtpu: 0.0.40
codegen_flags: <defaults>
</compile_context>

<pallas_src>
import math

import jax
import jax.numpy as jnp
from jax.experimental import pallas as pl
from jax.experimental.pallas import tpu as pltpu

_LANES = 128                       # TPU vreg lane width
_TILE_BYTES_TARGET = 4 * 1024 * 1024   # ~4 MiB per tile (8192 rows @ f32)


def _copy_kernel(x_ref, o_ref):
    # Elementwise identity on the current (rows, 128) VMEM tile.
    o_ref[...] = x_ref[...]


@jax.jit
def _identity_copy(x: jax.Array) -> jax.Array:
    """Explicit lane-dense, row-tiled device copy (only for copy_output=True)."""
    orig_shape = x.shape
    n = math.prod(orig_shape)
    itemsize = jnp.dtype(x.dtype).itemsize

    # Flatten and pad to a multiple of 128 lanes inside the jit so the
    # reshape/pad fuse with the kernel instead of materializing extra passes.
    flat = x.reshape(n)
    pad = (-n) % _LANES
    if pad:
        flat = jnp.pad(flat, (0, pad))
    rows = (n + pad) // _LANES
    x2 = flat.reshape(rows, _LANES)

    # ~4 MiB row tile, kept a multiple of 8 sublanes; a full-extent block is
    # always legal when the array is smaller than one tile.
    row_tile = max(1, _TILE_BYTES_TARGET // (_LANES * itemsize))
    row_tile = (row_tile // 8) * 8 or 8
    if rows <= row_tile:
        row_tile = rows

    grid = (pl.cdiv(rows, row_tile),)
    bytes_accessed = 2 * rows * _LANES * itemsize  # one read + one write pass

    out2 = pl.pallas_call(
        _copy_kernel,
        out_shape=jax.ShapeDtypeStruct((rows, _LANES), x.dtype),
        grid=grid,
        in_specs=[pl.BlockSpec((row_tile, _LANES), lambda i: (i, 0))],
        out_specs=pl.BlockSpec((row_tile, _LANES), lambda i: (i, 0)),
        compiler_params=pltpu.CompilerParams(
            dimension_semantics=("parallel",),
            # 4 MiB tile * 2 arrays * 2 buffers = 16 MiB working set; 32 MiB
            # limit clears v5e's 16 MiB scoped default and stays well under
            # v7x's 64 MiB physical VMEM.
            vmem_limit_bytes=32 * 1024 * 1024,
        ),
        cost_estimate=pl.CostEstimate(
            flops=0, transcendentals=0, bytes_accessed=bytes_accessed),
    )(x2)

    out_flat = out2.reshape(rows * _LANES)
    if pad:
        out_flat = out_flat[:n]
    return out_flat.reshape(orig_shape)


def deepspeech2_forward(x: jax.Array,
                        lengths: jax.Array | None = None,
                        *,
                        copy_output: bool = False):
    """Pallas equivalent of DeepSpeech2Model.forward (stub semantics).

    x:       (B, S, F) float
    lengths: (B,) int or None
    returns: (x, lengths-or-full(S))

    copy_output=True forces an explicit device copy via the Pallas kernel;
    the default path returns x untouched (zero HBM traffic), matching the
    reference semantics exactly.
    """
    B, S, _ = x.shape
    if lengths is None:
        out_lengths = jnp.full((B,), S, dtype=jnp.int32)
    else:
        out_lengths = lengths  # passthrough, same as the PyTorch reference

    out = _identity_copy(x) if copy_output else x
    return out, out_lengths


if __name__ == "__main__":
    key = jax.random.PRNGKey(0)

    # Small shapes consistent with (batch_size, seq_length, feature_dim).
    B, S, F = 2, 8, 16
    x = jax.random.normal(key, (B, S, F), dtype=jnp.float32)

    # Case 1: default path (no kernel, zero-copy) with lengths=None.
    out, out_lengths = deepspeech2_forward(x, None)
    jax.block_until_ready((out, out_lengths))
    assert out.shape == (B, S, F) and out.dtype == x.dtype
    assert out_lengths.shape == (B,)
    assert bool(jnp.all(out == x))
    assert bool(jnp.all(out_lengths == S))

    # Case 2: lengths provided -> passthrough.
    lengths = jnp.array([5, 8], dtype=jnp.int32)
    out2, out_lengths2 = deepspeech2_forward(x, lengths)
    jax.block_until_ready((out2, out_lengths2))
    assert bool(jnp.all(out2 == x))
    assert bool(jnp.all(out_lengths2 == lengths))

    # Case 3: explicit-copy path through the Pallas kernel (lane-divisible).
    out3, out_lengths3 = deepspeech2_forward(x, None, copy_output=True)
    jax.block_until_ready((out3, out_lengths3))
    assert bool(jnp.all(out3 == x))
    assert bool(jnp.all(out_lengths3 == S))

    # Case 4: multi-tile explicit copy (rows > one 8192-row tile -> grid > 1).
    B2, S2, F2 = 4, 1024, 512   # 2,097,152 elems -> 16384 rows -> 2 tiles (f32)
    xb = jax.random.normal(jax.random.PRNGKey(1), (B2, S2, F2), dtype=jnp.float32)
    outb, lb = deepspeech2_forward(xb, copy_output=True)
    jax.block_until_ready((outb, lb))
    assert bool(jnp.all(outb == xb))
    assert bool(jnp.all(lb == S2))

    # Case 5: non-lane-divisible shape -> pad-to-128 / copy / slice fallback.
    xc = jax.random.normal(jax.random.PRNGKey(2), (2, 8, 13), dtype=jnp.float32)
    outc, lc = deepspeech2_forward(xc, copy_output=True)
    jax.block_until_ready((outc, lc))
    assert bool(jnp.all(outc == xc))
    assert bool(jnp.all(lc == 8))

    print("KERNEL_OK")
</pallas_src>

<mosaic_0001>
module attributes {stable_mosaic.version = 11 : i64} {
  func.func @_copy_kernel(%arg0: i32, %arg1: memref<2x128xf32, #tpu.memory_space<vmem>>, %arg2: memref<2x128xf32, #tpu.memory_space<vmem>>) attributes {dimension_semantics = [#tpu.dimension_semantics<parallel>], iteration_bounds = array<i64: 1>, scalar_prefetch = 0 : i64, scratch_operands = 0 : i64, tpu.core_type = #tpu.core_type<tc>, window_params = [{transform_indices = @transform_0, window_bounds = array<i64: 2, 128>}, {transform_indices = @transform_1, window_bounds = array<i64: 2, 128>}]} {
    %c0 = arith.constant 0 : index
    %c0_0 = arith.constant 0 : index
    %0 = vector.load %arg1[%c0, %c0_0] : memref<2x128xf32, #tpu.memory_space<vmem>>, vector<2x128xf32>
    %c0_1 = arith.constant 0 : index
    %c0_2 = arith.constant 0 : index
    %1 = vector.load %arg2[%c0_1, %c0_2] : memref<2x128xf32, #tpu.memory_space<vmem>>, vector<2x128xf32>
    tpu.vector_store %arg2[%c0_1, %c0_2], %0 {strides = array<i32>} : memref<2x128xf32, #tpu.memory_space<vmem>>, vector<2x128xf32>,
    return
  }
  func.func @transform_0(%arg0: i32) -> (i32, i32) {
    %c0_i32 = arith.constant 0 : i32
    %c0_i32_0 = arith.constant 0 : i32
    return %arg0, %c0_i32 : i32, i32
  }
  func.func @transform_1(%arg0: i32) -> (i32, i32) {
    %c0_i32 = arith.constant 0 : i32
    %c0_i32_0 = arith.constant 0 : i32
    return %arg0, %c0_i32 : i32, i32
  }
}

</mosaic_0001>

<llo_original>
// kernel: _identity_copy.1
$region0: #{_identity_copy.1}
  #allocation0 [shape = 'u32[]', space=smem, size = 0x4, offset = 0x4, fixed_abs, tag = 'smem constant byte address 0x4 - core index']
  #allocation1 [shape = 'u32[144,128]{1,0:T(1,128)}', space=vmem, size = 0x12000, scoped, tag = 'internal scratch']
  %s0 = inlined_call_operand.vmem [shape: f32[2,128], index: 0, kind: input, shape index: {}]
  %s1 = inlined_call_operand.vmem [shape: f32[2,128], index: 1, kind: output, shape index: {}]
  %s2 = sld [smem:[#allocation0]]
  $region14: #{_identity_copy.1} parent=0
    _
  %s4 = ssub.s32 1, %s2
  %s5 = scalar_select 0, %s4, %s2
  // Predicated region
  $region2: #{_identity_copy.1} parent=0 // pred_check
    _
  $region3: #{_identity_copy.1} parent=0 // pred_check_branch
    %7 = sbr.rel (0) target = $region5
  $region4: #{_identity_copy.1} parent=0 // pred_region
    _
  $region5: #{_identity_copy.1} parent=0 // pred_fallthru
    _
  %v8 = vld [vmem:[%s0] sm:$0x3]
  %9 = vst [vmem:[%s1] sm:$0x3] %v8
  // Predicated region
  $region6: #{_identity_copy.1} parent=0 // pred_check
    _
  $region7: #{_identity_copy.1} parent=0 // pred_check_branch
    %11 = sbr.rel (0) target = $region9
  $region8: #{_identity_copy.1} parent=0 // pred_region
    _
  $region9: #{_identity_copy.1} parent=0 // pred_fallthru
    _
  // Predicated region
  $region10: #{_identity_copy.1} parent=0 // pred_check
    _
  $region11: #{_identity_copy.1} parent=0 // pred_check_branch
    %13 = sbr.rel (0) target = $region13
  $region12: #{_identity_copy.1} parent=0 // pred_region
    _
  $region13: #{_identity_copy.1} parent=0 // pred_fallthru
    _

</llo_original>
